<compile_context>
chip_gen: v7x
topology: tpu7x:2x2x1
jax: 0.10.0
libtpu: 0.0.40
codegen_flags: <defaults>
</compile_context>

<pallas_src>
import jax
import jax.numpy as jnp
from jax.experimental import pallas as pl
from jax.experimental.pallas import tpu as pltpu


def _round_up(v, m):
    return ((v + m - 1) // m) * m


def _sublane_multiple(dtype):
    # 8 for 4-byte, 16 for 2-byte, 32 for 1-byte dtypes.
    return max(8, 32 // jnp.dtype(dtype).itemsize)


def _largest_divisor(n, mult, cap):
    """Largest d with d | n, d % mult == 0, d <= cap; None if no such d."""
    best = None
    i = 1
    while i * i <= n:
        if n % i == 0:
            for d in (i, n // i):
                if d % mult == 0 and d <= cap and (best is None or d > best):
                    best = d
        i += 1
    return best


def _affine_kernel(x_ref, scale_ref, shift_ref, o_ref):
    # (tm, 1) scale/shift broadcast across the lane (spatial) axis on the VPU.
    x = x_ref[...].astype(o_ref.dtype)  # in-kernel dtype promotion (free)
    o_ref[...] = scale_ref[...] * x + shift_ref[...]


def feature_wise_affine(x, scale, shift, *, target_block_bytes=4 << 20,
                        max_tn=16384):
    """x: (B, C, H, W); scale, shift: (B, C, 1, 1). Returns scale * x + shift."""
    B, C, H, W = x.shape
    assert scale.shape == (B, C, 1, 1) and shift.shape == (B, C, 1, 1)

    out_dtype = jnp.result_type(x.dtype, scale.dtype, shift.dtype)
    x_item = jnp.dtype(x.dtype).itemsize
    o_item = jnp.dtype(out_dtype).itemsize
    max_item = max(x_item, o_item)
    # Sublane alignment required by both the x block and the out block.
    sub = max(_sublane_multiple(x.dtype), _sublane_multiple(out_dtype))

    M, HW = B * C, H * W

    # ---- lane (spatial) tile: multiple of 128 dividing HW, else full dim ----
    pad_cols = 0
    if HW % 128 == 0:
        tn = _largest_divisor(HW, 128, min(max_tn, HW))
    elif HW * max_item <= (8 << 20):
        # Full-dim block on the last axis is legal; only the tail vreg per row
        # gets a masked store.
        tn = HW
    else:
        # Rare fallback: huge, non-128-multiple spatial extent.
        pad_cols = _round_up(HW, 128) - HW
        tn = _largest_divisor(HW + pad_cols, 128, min(max_tn, HW + pad_cols))
    HWp = HW + pad_cols

    # ---- row (feature) tile: multiple-of-`sub` divisor of M, else full dim ----
    target_rows = max(sub, target_block_bytes // (tn * max_item))
    pad_rows = 0
    if M % sub == 0:
        tm = _largest_divisor(M, sub, min(target_rows, M)) or sub
    elif M * tn * max_item <= (16 << 20):
        tm = M  # ragged row count, but the whole axis fits as one block
    else:
        # Rare fallback: ragged and large -> pad rows.
        pad_rows = _round_up(M, sub) - M
        tm = _largest_divisor(M + pad_rows, sub,
                              min(target_rows, M + pad_rows)) or sub
    Mp = M + pad_rows

    # ---- wrapper-side views; x keeps its native dtype (cast in-kernel) ----
    x2 = x.reshape(M, HW)
    s2 = scale.reshape(M, 1).astype(out_dtype)
    b2 = shift.reshape(M, 1).astype(out_dtype)
    if pad_rows or pad_cols:
        # TODO(synk): rare fallback path; costs one extra HBM pass over x.
        x2 = jnp.pad(x2, ((0, pad_rows), (0, pad_cols)))
        if pad_rows:
            s2 = jnp.pad(s2, ((0, pad_rows), (0, 0)))
            b2 = jnp.pad(b2, ((0, pad_rows), (0, 0)))

    grid_m, grid_n = Mp // tm, HWp // tn

    # Megacore: ensure the leading parallel axis has >=2 iterations when
    # possible so both TensorCores (v7x) get grid work.
    if grid_m == 1 and grid_n > 1:
        grid = (grid_n, grid_m)
        x_map = lambda j, i: (i, j)
        ss_map = lambda j, i: (i, 0)
    else:
        grid = (grid_m, grid_n)
        x_map = lambda i, j: (i, j)
        ss_map = lambda i, j: (i, 0)

    x_blk = tm * tn * x_item
    o_blk = tm * tn * o_item
    ss_blk = _round_up(tm, _sublane_multiple(out_dtype)) * 128 * o_item
    vmem_bytes = 2 * (x_blk + o_blk) + 2 * 2 * ss_blk + (4 << 20)
    vmem_bytes = int(max(16 << 20, min(vmem_bytes, 40 << 20)))

    out2 = pl.pallas_call(
        _affine_kernel,
        out_shape=jax.ShapeDtypeStruct((Mp, HWp), out_dtype),
        grid_spec=pltpu.PrefetchScalarGridSpec(
            num_scalar_prefetch=0,
            grid=grid,
            in_specs=[
                pl.BlockSpec((tm, tn), x_map),
                pl.BlockSpec((tm, 1), ss_map),
                pl.BlockSpec((tm, 1), ss_map),
            ],
            out_specs=pl.BlockSpec((tm, tn), x_map),
        ),
        compiler_params=pltpu.CompilerParams(
            dimension_semantics=("parallel", "parallel"),
            vmem_limit_bytes=vmem_bytes,
        ),
    )(x2, s2, b2)

    if pad_rows or pad_cols:
        out2 = out2[:M, :HW]
    return out2.reshape(B, C, H, W)


if __name__ == "__main__":
    key = jax.random.PRNGKey(0)
    kx, ks, kb = jax.random.split(key, 3)

    B, C, H, W = 2, 4, 16, 16
    x = jax.random.normal(kx, (B, C, H, W), dtype=jnp.float32)
    scale = jax.random.normal(ks, (B, C, 1, 1), dtype=jnp.float32)
    shift = jax.random.normal(kb, (B, C, 1, 1), dtype=jnp.float32)

    out = feature_wise_affine(x, scale, shift)
    out = jax.block_until_ready(out)

    ref = scale * x + shift
    assert out.shape == ref.shape and out.dtype == ref.dtype
    assert jnp.allclose(out, ref, atol=1e-6, rtol=1e-6)

    print("KERNEL_OK")
</pallas_src>

<mosaic_0001>
module attributes {stable_mosaic.version = 11 : i64} {
  func.func @_affine_kernel(%arg0: i32, %arg1: i32, %arg2: memref<8x256xf32, #tpu.memory_space<vmem>>, %arg3: memref<8x1xf32, #tpu.memory_space<vmem>>, %arg4: memref<8x1xf32, #tpu.memory_space<vmem>>, %arg5: memref<8x256xf32, #tpu.memory_space<vmem>>) attributes {dimension_semantics = [#tpu.dimension_semantics<parallel>, #tpu.dimension_semantics<parallel>], iteration_bounds = array<i64: 1, 1>, scalar_prefetch = 0 : i64, scratch_operands = 0 : i64, tpu.core_type = #tpu.core_type<tc>, window_params = [{transform_indices = @transform_0, window_bounds = array<i64: 8, 256>}, {transform_indices = @transform_1, window_bounds = array<i64: 8, 1>}, {transform_indices = @transform_2, window_bounds = array<i64: 8, 1>}, {transform_indices = @transform_3, window_bounds = array<i64: 8, 256>}]} {
    %c0 = arith.constant 0 : index
    %c0_0 = arith.constant 0 : index
    %0 = vector.load %arg2[%c0, %c0_0] : memref<8x256xf32, #tpu.memory_space<vmem>>, vector<8x256xf32>
    %c0_1 = arith.constant 0 : index
    %c0_2 = arith.constant 0 : index
    %1 = vector.load %arg3[%c0_1, %c0_2] : memref<8x1xf32, #tpu.memory_space<vmem>>, vector<8x1xf32>
    %2 = vector.broadcast %1 : vector<8x1xf32> to vector<8x256xf32>
    %3 = arith.mulf %2, %0 : vector<8x256xf32>
    %c0_3 = arith.constant 0 : index
    %c0_4 = arith.constant 0 : index
    %4 = vector.load %arg4[%c0_3, %c0_4] : memref<8x1xf32, #tpu.memory_space<vmem>>, vector<8x1xf32>
    %5 = vector.broadcast %4 : vector<8x1xf32> to vector<8x256xf32>
    %6 = arith.addf %3, %5 : vector<8x256xf32>
    %c0_5 = arith.constant 0 : index
    %c0_6 = arith.constant 0 : index
    %7 = vector.load %arg5[%c0_5, %c0_6] : memref<8x256xf32, #tpu.memory_space<vmem>>, vector<8x256xf32>
    tpu.vector_store %arg5[%c0_5, %c0_6], %6 {strides = array<i32>} : memref<8x256xf32, #tpu.memory_space<vmem>>, vector<8x256xf32>,
    return
  }
  func.func @transform_0(%arg0: i32, %arg1: i32) -> (i32, i32) {
    %c0_i32 = arith.constant 0 : i32
    return %arg0, %arg1 : i32, i32
  }
  func.func @transform_1(%arg0: i32, %arg1: i32) -> (i32, i32) {
    %c0_i32 = arith.constant 0 : i32
    %c0_i32_0 = arith.constant 0 : i32
    return %arg0, %c0_i32 : i32, i32
  }
  func.func @transform_2(%arg0: i32, %arg1: i32) -> (i32, i32) {
    %c0_i32 = arith.constant 0 : i32
    %c0_i32_0 = arith.constant 0 : i32
    return %arg0, %c0_i32 : i32, i32
  }
  func.func @transform_3(%arg0: i32, %arg1: i32) -> (i32, i32) {
    %c0_i32 = arith.constant 0 : i32
    return %arg0, %arg1 : i32, i32
  }
}

</mosaic_0001>

<llo_original>
// kernel: tpu_custom_call.1
$region0: #{tpu_custom_call.1}
  #allocation0 [shape = 'u32[]', space=smem, size = 0x4, offset = 0x4, fixed_abs, tag = 'smem constant byte address 0x4 - core index']
  #allocation1 [shape = 'u32[144,128]{1,0:T(1,128)}', space=vmem, size = 0x12000, scoped, tag = 'internal scratch']
  %s0 = inlined_call_operand.vmem [shape: f32[8,256], index: 0, kind: input, shape index: {}]
  %s1 = inlined_call_operand.vmem [shape: f32[8,1], index: 1, kind: input, shape index: {}]
  %s2 = inlined_call_operand.vmem [shape: f32[8,1], index: 2, kind: input, shape index: {}]
  %s3 = inlined_call_operand.hbm [shape: f32[8,256], index: 3, kind: output, shape index: {}]
  %s4 = sld [smem:[#allocation0]]
  $region22: #{tpu_custom_call.1} parent=0
    _
  %s6 = ssub.s32 1, %s4
  %s7 = scalar_select 0, %s6, %s4
  $region1: #{tpu_custom_call.1} parent=0
    #allocation2 [shape = 'u8[8192]{0}', space=vmem, size = 0x2000, scoped, tag = 'output window, operand 0, single buffered']
    #allocation3 [shape = 's32[1]{0}', space=sflag, size = 0x4, scoped, tag = 'scoped memory for tpu_custom_call.1']
    %8 = vsyncpa [#allocation3], 0
    // Predicated region
    $region2: #{tpu_custom_call.1} parent=1 // pred_check
      _
    $region3: #{tpu_custom_call.1} parent=1 // pred_check_branch
      %10 = sbr.rel (0) target = $region5
    $region4: #{tpu_custom_call.1} parent=1 // pred_region
      _
    $region5: #{tpu_custom_call.1} parent=1 // pred_fallthru
      _
    // Predicated region
    $region6: #{tpu_custom_call.1} parent=1 // pred_check
      _
    $region7: #{tpu_custom_call.1} parent=1 // pred_check_branch
      %12 = sbr.rel (0) target = $region9
    $region8: #{tpu_custom_call.1} parent=1 // pred_region
      _
    $region9: #{tpu_custom_call.1} parent=1 // pred_fallthru
      _
    // Predicated region
    $region10: #{tpu_custom_call.1} parent=1 // pred_check
      _
    $region11: #{tpu_custom_call.1} parent=1 // pred_check_branch
      %14 = sbr.rel (0) target = $region13
    $region12: #{tpu_custom_call.1} parent=1 // pred_region
      _
    $region13: #{tpu_custom_call.1} parent=1 // pred_fallthru
      _
    %v15 = vld [vmem:[%s0] sm:$0xff]
    %v16 = vld [vmem:[%s0 + $0x8] sm:$0xff]
    %v17 = vld [vmem:[%s1] sm:$0xff]
    %19 = vset.pattern.permute.xlu0 0
    %20 = vperm.xlu0 %19, %v17
    %v21 = vpop.permute.xlu0 %20
    %v23 = vmul.f32 %v21, %v15
    %v24 = vmul.f32 %v21, %v16
    %v25 = vld [vmem:[%s2] sm:$0xff]
    %27 = vset.pattern.permute.xlu0 0
    %28 = vperm.xlu0 %27, %v25
    %v29 = vpop.permute.xlu0 %28
    %v31 = vadd.f32 %v23, %v29
    %v32 = vadd.f32 %v24, %v29
    %33 = vst [vmem:[#allocation2] sm:$0xff] %v31
    %34 = vst [vmem:[#allocation2 + $0x8] sm:$0xff] %v32
    // Predicated region
    $region14: #{tpu_custom_call.1} parent=1 // pred_check
      _
    $region15: #{tpu_custom_call.1} parent=1 // pred_check_branch
      %36 = sbr.rel (0) target = $region17
    $region16: #{tpu_custom_call.1} parent=1 // pred_region
      %s38 = ssub.s32 256, 256
      %39 = vsyncadd [#allocation3], %s38
      %s41 = sshll.u32 [#allocation2], 4
      %s42 = int_to_ptr.vmem [resolvable:$true] %s41
      %44 = dma.vmem_to_hbm [thread:$0]  %s42, 256, %s3, [#allocation3]
    $region17: #{tpu_custom_call.1} parent=1 // pred_fallthru
      _
    // Predicated region
    $region18: #{tpu_custom_call.1} parent=1 // pred_check
      _
    $region19: #{tpu_custom_call.1} parent=1 // pred_check_branch
      %46 = sbr.rel (0) target = $region21
    $region20: #{tpu_custom_call.1} parent=1 // pred_region
      %47 = dma.done [#allocation3], 256
    $region21: #{tpu_custom_call.1} parent=1 // pred_fallthru
      _
    %48 = vsyncpa [#allocation3], 1

</llo_original>
